<compile_context>
chip_gen: v5e
topology: v5e:2x2
jax: 0.10.0
libtpu: 0.0.40
codegen_flags: <defaults>
</compile_context>

<pallas_src>
import jax
import jax.numpy as jnp
from jax.experimental import pallas as pl
from jax.experimental.pallas import tpu as pltpu

D = 10            # real feature width (torch.nn.Linear(10, 10))
DP = 128          # lane-padded feature width
HALF = 64         # second lane half used for the merged-layer trick
NUM_LAYERS = 64
CHUNK = 8                         # layers per prefetched weight chunk
NCHUNKS = NUM_LAYERS // CHUNK     # 8 chunks


def model_kernel(x_ref, w0_ref, b0_ref, bm_ref, wm_hbm, o_ref, wbuf, sem, act):
    # x_ref : (B, DP)        padded input activations (VMEM)
    # w0_ref: (DP, DP)       top-level Linear weight, stored (in, out) (VMEM)
    # b0_ref: (1, DP)        top-level Linear bias (VMEM)
    # bm_ref: (L, DP)        merged per-layer biases (VMEM, 32 KiB)
    # wm_hbm: (L, DP, DP)    merged per-layer weights, raw HBM ref (pl.ANY)
    # o_ref : (B, DP)        output (VMEM)
    # wbuf  : (2*CHUNK, DP, DP) double-buffered weight staging (VMEM scratch)
    # sem   : DMA semaphores, shape (2,)
    # act   : (B, DP)        activation carried across chunks (VMEM scratch)

    def fetch(c, slot):
        pltpu.make_async_copy(
            wm_hbm.at[pl.ds(c * CHUNK, CHUNK)],
            wbuf.at[pl.ds(slot * CHUNK, CHUNK)],
            sem.at[slot],
        ).start()

    # Kick off the first weight-chunk DMA, then overlap it with the
    # top-level Linear(10,10).
    fetch(0, 0)

    h0 = jnp.dot(x_ref[...], w0_ref[...],
                 preferred_element_type=jnp.float32) + b0_ref[...]
    act[...] = h0

    @pl.loop(0, NCHUNKS)
    def _(c):
        slot = c % 2

        # Wait for this chunk's weights (src slice is only for shape matching).
        pltpu.make_async_copy(
            wm_hbm.at[pl.ds(0, CHUNK)],
            wbuf.at[pl.ds(slot * CHUNK, CHUNK)],
            sem.at[slot],
        ).wait()

        # Prefetch the next chunk into the other buffer slot while computing.
        @pl.when(c + 1 < NCHUNKS)
        def _():
            fetch(c + 1, 1 - slot)

        h = act[...]
        # Per-chunk merged biases: (CHUNK, DP) == one vreg, sublane-aligned.
        b_chunk = bm_ref[pl.ds(c * CHUNK, CHUNK), :]

        # Fully unrolled 8-layer chunk: lets the scheduler overlap MXU / EUP
        # latency across neighbouring layers.
        for j in range(CHUNK):
            wm = wbuf[slot * CHUNK + j]       # (DP, DP) merged layer weight
            bv = b_chunk[j:j + 1, :]          # (1, DP)  merged layer bias
            # a = sigmoid(relu(linear1(h)))  -> useful lanes 64..73
            s = jnp.dot(h, wm, preferred_element_type=jnp.float32) + bv
            a = jax.nn.sigmoid(jnp.maximum(s, 0.0))
            # h = relu(linear2(a))           -> useful lanes 0..9
            t = jnp.dot(a, wm, preferred_element_type=jnp.float32) + bv
            h = jnp.maximum(t, 0.0)

        act[...] = h

    o_ref[...] = act[...]


def init_params(key):
    """Deterministic init mimicking torch.nn.Linear (uniform +-1/sqrt(fan_in)),
    packed into the merged TPU layout."""
    bound = 1.0 / jnp.sqrt(jnp.float32(D))
    keys = jax.random.split(key, 2 + 4 * NUM_LAYERS)

    def u(k, shape):
        return jax.random.uniform(k, shape, jnp.float32, -bound, bound)

    # Top-level Linear(10,10): (out, in) torch convention -> (in, out) padded.
    w0t, b0t = u(keys[0], (D, D)), u(keys[1], (D,))
    w0 = jnp.zeros((DP, DP), jnp.float32).at[:D, :D].set(w0t.T)
    b0 = jnp.zeros((1, DP), jnp.float32).at[0, :D].set(b0t)

    wm_list, bm_list = [], []
    for l in range(NUM_LAYERS):
        k0, k1, k2, k3 = keys[2 + 4 * l: 6 + 4 * l]
        w1t, b1t = u(k0, (D, D)), u(k1, (D,))
        w2t, b2t = u(k2, (D, D)), u(k3, (D,))
        wm = (jnp.zeros((DP, DP), jnp.float32)
              .at[:D, HALF:HALF + D].set(w1t.T)     # linear1: 0..9 -> 64..73
              .at[HALF:HALF + D, :D].set(w2t.T))    # linear2: 64..73 -> 0..9
        bm = (jnp.zeros((DP,), jnp.float32)
              .at[HALF:HALF + D].set(b1t)           # b1 with linear1 output
              .at[:D].set(b2t))                     # b2 with linear2 output
        wm_list.append(wm)
        bm_list.append(bm)

    return w0, b0, jnp.stack(wm_list), jnp.stack(bm_list)


@jax.jit
def model_forward(x, w0, b0, wm, bm):
    B = x.shape[0]
    xp = jnp.zeros((B, DP), jnp.float32).at[:, :D].set(x)

    vmem = pl.BlockSpec(memory_space=pltpu.MemorySpace.VMEM)
    hbm = pl.BlockSpec(memory_space=pl.ANY)   # merged weights stay in HBM

    out = pl.pallas_call(
        model_kernel,
        out_shape=jax.ShapeDtypeStruct((B, DP), jnp.float32),
        in_specs=[vmem, vmem, vmem, vmem, hbm],
        out_specs=vmem,
        scratch_shapes=[
            pltpu.VMEM((2 * CHUNK, DP, DP), jnp.float32),  # weight double buffer
            pltpu.SemaphoreType.DMA((2,)),
            pltpu.VMEM((B, DP), jnp.float32),              # activation carry
        ],
    )(xp, w0, b0, bm, wm)
    return out[:, :D]


def reference_forward(x, w0, b0, wm, bm):
    """Pure-JAX reference with the original (un-merged) per-layer math."""
    h = x @ w0[:D, :D] + b0[0, :D]
    for l in range(NUM_LAYERS):
        w1 = wm[l, :D, HALF:HALF + D]
        b1 = bm[l, HALF:HALF + D]
        w2 = wm[l, HALF:HALF + D, :D]
        b2 = bm[l, :D]
        a = jax.nn.sigmoid(jnp.maximum(h @ w1 + b1, 0.0))
        h = jnp.maximum(a @ w2 + b2, 0.0)
    return h


if __name__ == "__main__":
    key = jax.random.PRNGKey(0)
    kx, kp = jax.random.split(key)

    B = 8
    x = jax.random.normal(kx, (B, D), jnp.float32)
    params = init_params(kp)

    y = model_forward(x, *params)
    jax.block_until_ready(y)

    y_ref = reference_forward(x, *params)
    assert y.shape == (B, D)
    assert jnp.allclose(y, y_ref, atol=1e-3, rtol=1e-3), "mismatch vs reference"

    print("KERNEL_OK")
</pallas_src>

<mosaic_0001>
module attributes {stable_mosaic.version = 11 : i64} {
  func.func @model_kernel(%arg0: memref<8x128xf32, #tpu.memory_space<vmem>>, %arg1: memref<128x128xf32, #tpu.memory_space<vmem>>, %arg2: memref<1x128xf32, #tpu.memory_space<vmem>>, %arg3: memref<64x128xf32, #tpu.memory_space<vmem>>, %arg4: memref<64x128x128xf32, #tpu.memory_space<any>>, %arg5: memref<8x128xf32, #tpu.memory_space<vmem>>, %arg6: memref<16x128x128xf32, #tpu.memory_space<vmem>>, %arg7: memref<2x!tpu.dma_semaphore, #tpu.memory_space<semaphore_mem>>, %arg8: memref<8x128xf32, #tpu.memory_space<vmem>>) attributes {dimension_semantics = [], scalar_prefetch = 0 : i64, scratch_operands = 3 : i64, tpu.core_type = #tpu.core_type<tc>} {
    %c0_i32 = arith.constant 0 : i32
    %c0_i32_0 = arith.constant 0 : i32
    %c0_i32_1 = arith.constant 0 : i32
    %c0_i32_2 = arith.constant 0 : i32
    %0 = tpu.memref_slice %arg4[%c0_i32_0, %c0_i32_1, %c0_i32_2] : memref<64x128x128xf32, #tpu.memory_space<any>> -> memref<8x128x128xf32, #tpu.memory_space<any>>
    %c0_i32_3 = arith.constant 0 : i32
    %c0_i32_4 = arith.constant 0 : i32
    %c0_i32_5 = arith.constant 0 : i32
    %1 = tpu.memref_slice %arg6[%c0_i32_3, %c0_i32_4, %c0_i32_5] : memref<16x128x128xf32, #tpu.memory_space<vmem>> -> memref<8x128x128xf32, #tpu.memory_space<vmem>>
    %2 = tpu.memref_slice %arg7[%c0_i32] : memref<2x!tpu.dma_semaphore, #tpu.memory_space<semaphore_mem>> -> memref<1x!tpu.dma_semaphore, #tpu.memory_space<semaphore_mem>>
    %3 = tpu.memref_squeeze %2 : memref<1x!tpu.dma_semaphore, #tpu.memory_space<semaphore_mem>> -> memref<!tpu.dma_semaphore, #tpu.memory_space<semaphore_mem>>
    tpu.enqueue_dma source(%0 : memref<8x128x128xf32, #tpu.memory_space<any>>) target(%1 : memref<8x128x128xf32, #tpu.memory_space<vmem>>) target_semaphore(%3 : memref<!tpu.dma_semaphore, #tpu.memory_space<semaphore_mem>>)
    %c0 = arith.constant 0 : index
    %c0_6 = arith.constant 0 : index
    %4 = vector.load %arg0[%c0, %c0_6] : memref<8x128xf32, #tpu.memory_space<vmem>>, vector<8x128xf32>
    %c0_7 = arith.constant 0 : index
    %c0_8 = arith.constant 0 : index
    %5 = vector.load %arg1[%c0_7, %c0_8] : memref<128x128xf32, #tpu.memory_space<vmem>>, vector<128x128xf32>
    %cst = arith.constant dense<0.000000e+00> : vector<8x128xf32>
    %6 = tpu.matmul %4, %5, %cst {dimension_numbers = #tpu.dot_dimension_numbers<[1], [0], [0], [1], [0, 0, 1, 1], [], []>} : vector<8x128xf32>, vector<128x128xf32>, vector<8x128xf32> -> vector<8x128xf32>
    %c0_9 = arith.constant 0 : index
    %c0_10 = arith.constant 0 : index
    %7 = vector.load %arg2[%c0_9, %c0_10] : memref<1x128xf32, #tpu.memory_space<vmem>>, vector<1x128xf32>
    %8 = vector.broadcast %7 : vector<1x128xf32> to vector<8x128xf32>
    %9 = arith.addf %6, %8 : vector<8x128xf32>
    %c0_11 = arith.constant 0 : index
    %c0_12 = arith.constant 0 : index
    %10 = vector.load %arg8[%c0_11, %c0_12] : memref<8x128xf32, #tpu.memory_space<vmem>>, vector<8x128xf32>
    tpu.vector_store %arg8[%c0_11, %c0_12], %9 {strides = array<i32>} : memref<8x128xf32, #tpu.memory_space<vmem>>, vector<8x128xf32>,
    %c0_i32_13 = arith.constant 0 : i32
    %c8_i32 = arith.constant 8 : i32
    %11 = arith.addi %c0_i32_13, %c8_i32 : i32
    %c1_i32 = arith.constant 1 : i32
    scf.for %arg9 = %c0_i32_13 to %11 step %c1_i32  : i32 {
      %c1_i32_19 = arith.constant 1 : i32
      %14 = arith.muli %arg9, %c1_i32_19 : i32
      %c0_i32_20 = arith.constant 0 : i32
      %15 = arith.addi %c0_i32_20, %14 : i32
      %c2_i32 = arith.constant 2 : i32
      %c0_i32_21 = arith.constant 0 : i32
      %16 = arith.cmpi eq, %c2_i32, %c0_i32_21 : i32
      %c1_i32_22 = arith.constant 1 : i32
      %17 = arith.select %16, %c1_i32_22, %c2_i32 : i32
      %18 = arith.remsi %15, %17 : i32
      %c0_i32_23 = arith.constant 0 : i32
      %19 = arith.cmpi ne, %18, %c0_i32_23 : i32
      %c0_i32_24 = arith.constant 0 : i32
      %20 = arith.cmpi slt, %18, %c0_i32_24 : i32
      %c0_i32_25 = arith.constant 0 : i32
      %21 = arith.cmpi slt, %17, %c0_i32_25 : i32
      %22 = arith.xori %20, %21 : i1
      %23 = arith.andi %22, %19 : i1
      %24 = arith.addi %18, %17 : i32
      %25 = arith.select %23, %24, %18 : i32
      %c8_i32_26 = arith.constant 8 : i32
      %26 = arith.muli %25, %c8_i32_26 : i32
      %c0_i32_27 = arith.constant 0 : i32
      %c0_i32_28 = arith.constant 0 : i32
      %c0_i32_29 = arith.constant 0 : i32
      %27 = tpu.memref_slice %arg4[%c0_i32_27, %c0_i32_28, %c0_i32_29] : memref<64x128x128xf32, #tpu.memory_space<any>> -> memref<8x128x128xf32, #tpu.memory_space<any>>
      %c0_i32_30 = arith.constant 0 : i32
      %c0_i32_31 = arith.constant 0 : i32
      %28 = tpu.memref_slice %arg6[%26, %c0_i32_30, %c0_i32_31] : memref<16x128x128xf32, #tpu.memory_space<vmem>> -> memref<8x128x128xf32, #tpu.memory_space<vmem>>
      %29 = tpu.memref_slice %arg7[%25] : memref<2x!tpu.dma_semaphore, #tpu.memory_space<semaphore_mem>> -> memref<1x!tpu.dma_semaphore, #tpu.memory_space<semaphore_mem>>
      %30 = tpu.memref_squeeze %29 : memref<1x!tpu.dma_semaphore, #tpu.memory_space<semaphore_mem>> -> memref<!tpu.dma_semaphore, #tpu.memory_space<semaphore_mem>>
      tpu.wait_dma2 semaphore(%30 : memref<!tpu.dma_semaphore, #tpu.memory_space<semaphore_mem>>) src(%27 : memref<8x128x128xf32, #tpu.memory_space<any>>) dst(%28 : memref<8x128x128xf32, #tpu.memory_space<vmem>>)
      %c1_i32_32 = arith.constant 1 : i32
      %31 = arith.addi %15, %c1_i32_32 : i32
      %c8_i32_33 = arith.constant 8 : i32
      %32 = arith.cmpi slt, %31, %c8_i32_33 : i32
      %33 = arith.extui %32 : i1 to i32
      %c0_i32_34 = arith.constant 0 : i32
      %34 = arith.cmpi ne, %33, %c0_i32_34 : i32
      scf.if %34 {
        %c1_i32_108 = arith.constant 1 : i32
        %208 = arith.addi %15, %c1_i32_108 : i32
        %c1_i32_109 = arith.constant 1 : i32
        %209 = arith.subi %c1_i32_109, %25 : i32
        %c8_i32_110 = arith.constant 8 : i32
        %210 = arith.muli %208, %c8_i32_110 : i32
        %c8_i32_111 = arith.constant 8 : i32
        %211 = arith.muli %209, %c8_i32_111 : i32
        %c0_i32_112 = arith.constant 0 : i32
        %c0_i32_113 = arith.constant 0 : i32
        %212 = tpu.memref_slice %arg4[%210, %c0_i32_112, %c0_i32_113] : memref<64x128x128xf32, #tpu.memory_space<any>> -> memref<8x128x128xf32, #tpu.memory_space<any>>
        %c0_i32_114 = arith.constant 0 : i32
        %c0_i32_115 = arith.constant 0 : i32
        %213 = tpu.memref_slice %arg6[%211, %c0_i32_114, %c0_i32_115] : memref<16x128x128xf32, #tpu.memory_space<vmem>> -> memref<8x128x128xf32, #tpu.memory_space<vmem>>
        %214 = tpu.memref_slice %arg7[%209] : memref<2x!tpu.dma_semaphore, #tpu.memory_space<semaphore_mem>> -> memref<1x!tpu.dma_semaphore, #tpu.memory_space<semaphore_mem>>
        %215 = tpu.memref_squeeze %214 : memref<1x!tpu.dma_semaphore, #tpu.memory_space<semaphore_mem>> -> memref<!tpu.dma_semaphore, #tpu.memory_space<semaphore_mem>>
        tpu.enqueue_dma source(%212 : memref<8x128x128xf32, #tpu.memory_space<any>>) target(%213 : memref<8x128x128xf32, #tpu.memory_space<vmem>>) target_semaphore(%215 : memref<!tpu.dma_semaphore, #tpu.memory_space<semaphore_mem>>)
      } else {
      }
      %c0_35 = arith.constant 0 : index
      %c0_36 = arith.constant 0 : index
      %35 = vector.load %arg8[%c0_35, %c0_36] : memref<8x128xf32, #tpu.memory_space<vmem>>, vector<8x128xf32>
      %c8_i32_37 = arith.constant 8 : i32
      %36 = arith.muli %15, %c8_i32_37 : i32
      %37 = arith.index_cast %36 : i32 to index
      %c0_38 = arith.constant 0 : index
      %38 = vector.load %arg3[%37, %c0_38] : memref<64x128xf32, #tpu.memory_space<vmem>>, vector<8x128xf32>
      %c8_i32_39 = arith.constant 8 : i32
      %39 = arith.muli %25, %c8_i32_39 : i32
      %c0_i32_40 = arith.constant 0 : i32
      %40 = arith.addi %39, %c0_i32_40 : i32
      %41 = arith.index_cast %40 : i32 to index
      %c0_41 = arith.constant 0 : index
      %c0_42 = arith.constant 0 : index
      %42 = vector.load %arg6[%41, %c0_41, %c0_42] : memref<16x128x128xf32, #tpu.memory_space<vmem>>, vector<1x128x128xf32>
      %43 = vector.shape_cast %42 : vector<1x128x128xf32> to vector<128x128xf32>
      %44 = vector.extract_strided_slice %38 {offsets = [0, 0], sizes = [1, 128], strides = [1, 1]} : vector<8x128xf32> to vector<1x128xf32>
      %cst_43 = arith.constant dense<0.000000e+00> : vector<8x128xf32>
      %45 = tpu.matmul %35, %43, %cst_43 {dimension_numbers = #tpu.dot_dimension_numbers<[1], [0], [0], [1], [0, 0, 1, 1], [], []>} : vector<8x128xf32>, vector<128x128xf32>, vector<8x128xf32> -> vector<8x128xf32>
      %46 = vector.broadcast %44 : vector<1x128xf32> to vector<8x128xf32>
      %47 = arith.addf %45, %46 : vector<8x128xf32>
      %cst_44 = arith.constant 0.000000e+00 : f32
      %48 = vector.broadcast %cst_44 : f32 to vector<8x128xf32>
      %49 = arith.maximumf %47, %48 : vector<8x128xf32>
      %50 = arith.negf %49 : vector<8x128xf32>
      %51 = math.exp %50 : vector<8x128xf32>
      %cst_45 = arith.constant 1.000000e+00 : f32
      %52 = vector.broadcast %cst_45 : f32 to vector<8x128xf32>
      %53 = arith.addf %52, %51 : vector<8x128xf32>
      %54 = arith.divf %52, %53 : vector<8x128xf32>
      %cst_46 = arith.constant dense<0.000000e+00> : vector<8x128xf32>
      %55 = tpu.matmul %54, %43, %cst_46 {dimension_numbers = #tpu.dot_dimension_numbers<[1], [0], [0], [1], [0, 0, 1, 1], [], []>} : vector<8x128xf32>, vector<128x128xf32>, vector<8x128xf32> -> vector<8x128xf32>
      %56 = vector.broadcast %44 : vector<1x128xf32> to vector<8x128xf32>
      %57 = arith.addf %55, %56 : vector<8x128xf32>
      %cst_47 = arith.constant 0.000000e+00 : f32
      %58 = vector.broadcast %cst_47 : f32 to vector<8x128xf32>
      %59 = arith.maximumf %57, %58 : vector<8x128xf32>
      %c8_i32_48 = arith.constant 8 : i32
      %60 = arith.muli %25, %c8_i32_48 : i32
      %c1_i32_49 = arith.constant 1 : i32
      %61 = arith.addi %60, %c1_i32_49 : i32
      %62 = arith.index_cast %61 : i32 to index
      %c0_50 = arith.constant 0 : index
      %c0_51 = arith.constant 0 : index
      %63 = vector.load %arg6[%62, %c0_50, %c0_51] : memref<16x128x128xf32, #tpu.memory_space<vmem>>, vector<1x128x128xf32>
      %64 = vector.shape_cast %63 : vector<1x128x128xf32> to vector<128x128xf32>
      %65 = vector.extract_strided_slice %38 {offsets = [1, 0], sizes = [1, 128], strides = [1, 1]} : vector<8x128xf32> to vector<1x128xf32>
      %cst_52 = arith.constant dense<0.000000e+00> : vector<8x128xf32>
      %66 = tpu.matmul %59, %64, %cst_52 {dimension_numbers = #tpu.dot_dimension_numbers<[1], [0], [0], [1], [0, 0, 1, 1], [], []>} : vector<8x128xf32>, vector<128x128xf32>, vector<8x128xf32> -> vector<8x128xf32>
      %67 = vector.broadcast %65 : vector<1x128xf32> to vector<8x128xf32>
      %68 = arith.addf %66, %67 : vector<8x128xf32>
      %cst_53 = arith.constant 0.000000e+00 : f32
      %69 = vector.broadcast %cst_53 : f32 to vector<8x128xf32>
      %70 = arith.maximumf %68, %69 : vector<8x128xf32>
      %71 = arith.negf %70 : vector<8x128xf32>
      %72 = math.exp %71 : vector<8x128xf32>
      %cst_54 = arith.constant 1.000000e+00 : f32
      %73 = vector.broadcast %cst_54 : f32 to vector<8x128xf32>
      %74 = arith.addf %73, %72 : vector<8x128xf32>
      %75 = arith.divf %73, %74 : vector<8x128xf32>
      %cst_55 = arith.constant dense<0.000000e+00> : vector<8x128xf32>
      %76 = tpu.matmul %75, %64, %cst_55 {dimension_numbers = #tpu.dot_dimension_numbers<[1], [0], [0], [1], [0, 0, 1, 1], [], []>} : vector<8x128xf32>, vector<128x128xf32>, vector<8x128xf32> -> vector<8x128xf32>
      %77 = vector.broadcast %65 : vector<1x128xf32> to vector<8x128xf32>
      %78 = arith.addf %76, %77 : vector<8x128xf32>
      %cst_56 = arith.constant 0.000000e+00 : f32
      %79 = vector.broadcast %cst_56 : f32 to vector<8x128xf32>
      %80 = arith.maximumf %78, %79 : vector<8x128xf32>
      %c8_i32_57 = arith.constant 8 : i32
      %81 = arith.muli %25, %c8_i32_57 : i32
      %c2_i32_58 = arith.constant 2 : i32
      %82 = arith.addi %81, %c2_i32_58 : i32
      %83 = arith.index_cast %82 : i32 to index
      %c0_59 = arith.constant 0 : index
      %c0_60 = arith.constant 0 : index
      %84 = vector.load %arg6[%83, %c0_59, %c0_60] : memref<16x128x128xf32, #tpu.memory_space<vmem>>, vector<1x128x128xf32>
      %85 = vector.shape_cast %84 : vector<1x128x128xf32> to vector<128x128xf32>
      %86 = vector.extract_strided_slice %38 {offsets = [2, 0], sizes = [1, 128], strides = [1, 1]} : vector<8x128xf32> to vector<1x128xf32>
      %cst_61 = arith.constant dense<0.000000e+00> : vector<8x128xf32>
      %87 = tpu.matmul %80, %85, %cst_61 {dimension_numbers = #tpu.dot_dimension_numbers<[1], [0], [0], [1], [0, 0, 1, 1], [], []>} : vector<8x128xf32>, vector<128x128xf32>, vector<8x128xf32> -> vector<8x128xf32>
      %88 = vector.broadcast %86 : vector<1x128xf32> to vector<8x128xf32>
      %89 = arith.addf %87, %88 : vector<8x128xf32>
      %cst_62 = arith.constant 0.000000e+00 : f32
      %90 = vector.broadcast %cst_62 : f32 to vector<8x128xf32>
      %91 = arith.maximumf %89, %90 : vector<8x128xf32>
      %92 = arith.negf %91 : vector<8x128xf32>
      %93 = math.exp %92 : vector<8x128xf32>
      %cst_63 = arith.constant 1.000000e+00 : f32
      %94 = vector.broadcast %cst_63 : f32 to vector<8x128xf32>
      %95 = arith.addf %94, %93 : vector<8x128xf32>
      %96 = arith.divf %94, %95 : vector<8x128xf32>
      %cst_64 = arith.constant dense<0.000000e+00> : vector<8x128xf32>
      %97 = tpu.matmul %96, %85, %cst_64 {dimension_numbers = #tpu.dot_dimension_numbers<[1], [0], [0], [1], [0, 0, 1, 1], [], []>} : vector<8x128xf32>, vector<128x128xf32>, vector<8x128xf32> -> vector<8x128xf32>
      %98 = vector.broadcast %86 : vector<1x128xf32> to vector<8x128xf32>
      %99 = arith.addf %97, %98 : vector<8x128xf32>
      %cst_65 = arith.constant 0.000000e+00 : f32
      %100 = vector.broadcast %cst_65 : f32 to vector<8x128xf32>
      %101 = arith.maximumf %99, %100 : vector<8x128xf32>
      %c8_i32_66 = arith.constant 8 : i32
      %102 = arith.muli %25, %c8_i32_66 : i32
      %c3_i32 = arith.constant 3 : i32
      %103 = arith.addi %102, %c3_i32 : i32
      %104 = arith.index_cast %103 : i32 to index
      %c0_67 = arith.constant 0 : index
      %c0_68 = arith.constant 0 : index
      %105 = vector.load %arg6[%104, %c0_67, %c0_68] : memref<16x128x128xf32, #tpu.memory_space<vmem>>, vector<1x128x128xf32>
      %106 = vector.shape_cast %105 : vector<1x128x128xf32> to vector<128x128xf32>
      %107 = vector.extract_strided_slice %38 {offsets = [3, 0], sizes = [1, 128], strides = [1, 1]} : vector<8x128xf32> to vector<1x128xf32>
      %cst_69 = arith.constant dense<0.000000e+00> : vector<8x128xf32>
      %108 = tpu.matmul %101, %106, %cst_69 {dimension_numbers = #tpu.dot_dimension_numbers<[1], [0], [0], [1], [0, 0, 1, 1], [], []>} : vector<8x128xf32>, vector<128x128xf32>, vector<8x128xf32> -> vector<8x128xf32>
      %109 = vector.broadcast %107 : vector<1x128xf32> to vector<8x128xf32>
      %110 = arith.addf %108, %109 : vector<8x128xf32>
      %cst_70 = arith.constant 0.000000e+00 : f32
      %111 = vector.broadcast %cst_70 : f32 to vector<8x128xf32>
      %112 = arith.maximumf %110, %111 : vector<8x128xf32>
      %113 = arith.negf %112 : vector<8x128xf32>
      %114 = math.exp %113 : vector<8x128xf32>
      %cst_71 = arith.constant 1.000000e+00 : f32
      %115 = vector.broadcast %cst_71 : f32 to vector<8x128xf32>
      %116 = arith.addf %115, %114 : vector<8x128xf32>
      %117 = arith.divf %115, %116 : vector<8x128xf32>
      %cst_72 = arith.constant dense<0.000000e+00> : vector<8x128xf32>
      %118 = tpu.matmul %117, %106, %cst_72 {dimension_numbers = #tpu.dot_dimension_numbers<[1], [0], [0], [1], [0, 0, 1, 1], [], []>} : vector<8x128xf32>, vector<128x128xf32>, vector<8x128xf32> -> vector<8x128xf32>
      %119 = vector.broadcast %107 : vector<1x128xf32> to vector<8x128xf32>
      %120 = arith.addf %118, %119 : vector<8x128xf32>
      %cst_73 = arith.constant 0.000000e+00 : f32
      %121 = vector.broadcast %cst_73 : f32 to vector<8x128xf32>
      %122 = arith.maximumf %120, %121 : vector<8x128xf32>
      %c8_i32_74 = arith.constant 8 : i32
      %123 = arith.muli %25, %c8_i32_74 : i32
      %c4_i32 = arith.constant 4 : i32
      %124 = arith.addi %123, %c4_i32 : i32
      %125 = arith.index_cast %124 : i32 to index
      %c0_75 = arith.constant 0 : index
      %c0_76 = arith.constant 0 : index
      %126 = vector.load %arg6[%125, %c0_75, %c0_76] : memref<16x128x128xf32, #tpu.memory_space<vmem>>, vector<1x128x128xf32>
      %127 = vector.shape_cast %126 : vector<1x128x128xf32> to vector<128x128xf32>
      %128 = vector.extract_strided_slice %38 {offsets = [4, 0], sizes = [1, 128], strides = [1, 1]} : vector<8x128xf32> to vector<1x128xf32>
      %cst_77 = arith.constant dense<0.000000e+00> : vector<8x128xf32>
      %129 = tpu.matmul %122, %127, %cst_77 {dimension_numbers = #tpu.dot_dimension_numbers<[1], [0], [0], [1], [0, 0, 1, 1], [], []>} : vector<8x128xf32>, vector<128x128xf32>, vector<8x128xf32> -> vector<8x128xf32>
      %130 = vector.broadcast %128 : vector<1x128xf32> to vector<8x128xf32>
      %131 = arith.addf %129, %130 : vector<8x128xf32>
      %cst_78 = arith.constant 0.000000e+00 : f32
      %132 = vector.broadcast %cst_78 : f32 to vector<8x128xf32>
      %133 = arith.maximumf %131, %132 : vector<8x128xf32>
      %134 = arith.negf %133 : vector<8x128xf32>
      %135 = math.exp %134 : vector<8x128xf32>
      %cst_79 = arith.constant 1.000000e+00 : f32
      %136 = vector.broadcast %cst_79 : f32 to vector<8x128xf32>
      %137 = arith.addf %136, %135 : vector<8x128xf32>
      %138 = arith.divf %136, %137 : vector<8x128xf32>
      %cst_80 = arith.constant dense<0.000000e+00> : vector<8x128xf32>
      %139 = tpu.matmul %138, %127, %cst_80 {dimension_numbers = #tpu.dot_dimension_numbers<[1], [0], [0], [1], [0, 0, 1, 1], [], []>} : vector<8x128xf32>, vector<128x128xf32>, vector<8x128xf32> -> vector<8x128xf32>
      %140 = vector.broadcast %128 : vector<1x128xf32> to vector<8x128xf32>
      %141 = arith.addf %139, %140 : vector<8x128xf32>
      %cst_81 = arith.constant 0.000000e+00 : f32
      %142 = vector.broadcast %cst_81 : f32 to vector<8x128xf32>
      %143 = arith.maximumf %141, %142 : vector<8x128xf32>
      %c8_i32_82 = arith.constant 8 : i32
      %144 = arith.muli %25, %c8_i32_82 : i32
      %c5_i32 = arith.constant 5 : i32
      %145 = arith.addi %144, %c5_i32 : i32
      %146 = arith.index_cast %145 : i32 to index
      %c0_83 = arith.constant 0 : index
      %c0_84 = arith.constant 0 : index
      %147 = vector.load %arg6[%146, %c0_83, %c0_84] : memref<16x128x128xf32, #tpu.memory_space<vmem>>, vector<1x128x128xf32>
      %148 = vector.shape_cast %147 : vector<1x128x128xf32> to vector<128x128xf32>
      %149 = vector.extract_strided_slice %38 {offsets = [5, 0], sizes = [1, 128], strides = [1, 1]} : vector<8x128xf32> to vector<1x128xf32>
      %cst_85 = arith.constant dense<0.000000e+00> : vector<8x128xf32>
      %150 = tpu.matmul %143, %148, %cst_85 {dimension_numbers = #tpu.dot_dimension_numbers<[1], [0], [0], [1], [0, 0, 1, 1], [], []>} : vector<8x128xf32>, vector<128x128xf32>, vector<8x128xf32> -> vector<8x128xf32>
      %151 = vector.broadcast %149 : vector<1x128xf32> to vector<8x128xf32>
      %152 = arith.addf %150, %151 : vector<8x128xf32>
      %cst_86 = arith.constant 0.000000e+00 : f32
      %153 = vector.broadcast %cst_86 : f32 to vector<8x128xf32>
      %154 = arith.maximumf %152, %153 : vector<8x128xf32>
      %155 = arith.negf %154 : vector<8x128xf32>
      %156 = math.exp %155 : vector<8x128xf32>
      %cst_87 = arith.constant 1.000000e+00 : f32
      %157 = vector.broadcast %cst_87 : f32 to vector<8x128xf32>
      %158 = arith.addf %157, %156 : vector<8x128xf32>
      %159 = arith.divf %157, %158 : vector<8x128xf32>
      %cst_88 = arith.constant dense<0.000000e+00> : vector<8x128xf32>
      %160 = tpu.matmul %159, %148, %cst_88 {dimension_numbers = #tpu.dot_dimension_numbers<[1], [0], [0], [1], [0, 0, 1, 1], [], []>} : vector<8x128xf32>, vector<128x128xf32>, vector<8x128xf32> -> vector<8x128xf32>
      %161 = vector.broadcast %149 : vector<1x128xf32> to vector<8x128xf32>
      %162 = arith.addf %160, %161 : vector<8x128xf32>
      %cst_89 = arith.constant 0.000000e+00 : f32
      %163 = vector.broadcast %cst_89 : f32 to vector<8x128xf32>
      %164 = arith.maximumf %162, %163 : vector<8x128xf32>
      %c8_i32_90 = arith.constant 8 : i32
      %165 = arith.muli %25, %c8_i32_90 : i32
      %c6_i32 = arith.constant 6 : i32
      %166 = arith.addi %165, %c6_i32 : i32
      %167 = arith.index_cast %166 : i32 to index
      %c0_91 = arith.constant 0 : index
      %c0_92 = arith.constant 0 : index
      %168 = vector.load %arg6[%167, %c0_91, %c0_92] : memref<16x128x128xf32, #tpu.memory_space<vmem>>, vector<1x128x128xf32>
      %169 = vector.shape_cast %168 : vector<1x128x128xf32> to vector<128x128xf32>
      %170 = vector.extract_strided_slice %38 {offsets = [6, 0], sizes = [1, 128], strides = [1, 1]} : vector<8x128xf32> to vector<1x128xf32>
      %cst_93 = arith.constant dense<0.000000e+00> : vector<8x128xf32>
      %171 = tpu.matmul %164, %169, %cst_93 {dimension_numbers = #tpu.dot_dimension_numbers<[1], [0], [0], [1], [0, 0, 1, 1], [], []>} : vector<8x128xf32>, vector<128x128xf32>, vector<8x128xf32> -> vector<8x128xf32>
      %172 = vector.broadcast %170 : vector<1x128xf32> to vector<8x128xf32>
      %173 = arith.addf %171, %172 : vector<8x128xf32>
      %cst_94 = arith.constant 0.000000e+00 : f32
      %174 = vector.broadcast %cst_94 : f32 to vector<8x128xf32>
      %175 = arith.maximumf %173, %174 : vector<8x128xf32>
      %176 = arith.negf %175 : vector<8x128xf32>
      %177 = math.exp %176 : vector<8x128xf32>
      %cst_95 = arith.constant 1.000000e+00 : f32
      %178 = vector.broadcast %cst_95 : f32 to vector<8x128xf32>
      %179 = arith.addf %178, %177 : vector<8x128xf32>
      %180 = arith.divf %178, %179 : vector<8x128xf32>
      %cst_96 = arith.constant dense<0.000000e+00> : vector<8x128xf32>
      %181 = tpu.matmul %180, %169, %cst_96 {dimension_numbers = #tpu.dot_dimension_numbers<[1], [0], [0], [1], [0, 0, 1, 1], [], []>} : vector<8x128xf32>, vector<128x128xf32>, vector<8x128xf32> -> vector<8x128xf32>
      %182 = vector.broadcast %170 : vector<1x128xf32> to vector<8x128xf32>
      %183 = arith.addf %181, %182 : vector<8x128xf32>
      %cst_97 = arith.constant 0.000000e+00 : f32
      %184 = vector.broadcast %cst_97 : f32 to vector<8x128xf32>
      %185 = arith.maximumf %183, %184 : vector<8x128xf32>
      %c8_i32_98 = arith.constant 8 : i32
      %186 = arith.muli %25, %c8_i32_98 : i32
      %c7_i32 = arith.constant 7 : i32
      %187 = arith.addi %186, %c7_i32 : i32
      %188 = arith.index_cast %187 : i32 to index
      %c0_99 = arith.constant 0 : index
      %c0_100 = arith.constant 0 : index
      %189 = vector.load %arg6[%188, %c0_99, %c0_100] : memref<16x128x128xf32, #tpu.memory_space<vmem>>, vector<1x128x128xf32>
      %190 = vector.shape_cast %189 : vector<1x128x128xf32> to vector<128x128xf32>
      %191 = vector.extract_strided_slice %38 {offsets = [7, 0], sizes = [1, 128], strides = [1, 1]} : vector<8x128xf32> to vector<1x128xf32>
      %cst_101 = arith.constant dense<0.000000e+00> : vector<8x128xf32>
      %192 = tpu.matmul %185, %190, %cst_101 {dimension_numbers = #tpu.dot_dimension_numbers<[1], [0], [0], [1], [0, 0, 1, 1], [], []>} : vector<8x128xf32>, vector<128x128xf32>, vector<8x128xf32> -> vector<8x128xf32>
      %193 = vector.broadcast %191 : vector<1x128xf32> to vector<8x128xf32>
      %194 = arith.addf %192, %193 : vector<8x128xf32>
      %cst_102 = arith.constant 0.000000e+00 : f32
      %195 = vector.broadcast %cst_102 : f32 to vector<8x128xf32>
      %196 = arith.maximumf %194, %195 : vector<8x128xf32>
      %197 = arith.negf %196 : vector<8x128xf32>
      %198 = math.exp %197 : vector<8x128xf32>
      %cst_103 = arith.constant 1.000000e+00 : f32
      %199 = vector.broadcast %cst_103 : f32 to vector<8x128xf32>
      %200 = arith.addf %199, %198 : vector<8x128xf32>
      %201 = arith.divf %199, %200 : vector<8x128xf32>
      %cst_104 = arith.constant dense<0.000000e+00> : vector<8x128xf32>
      %202 = tpu.matmul %201, %190, %cst_104 {dimension_numbers = #tpu.dot_dimension_numbers<[1], [0], [0], [1], [0, 0, 1, 1], [], []>} : vector<8x128xf32>, vector<128x128xf32>, vector<8x128xf32> -> vector<8x128xf32>
      %203 = vector.broadcast %191 : vector<1x128xf32> to vector<8x128xf32>
      %204 = arith.addf %202, %203 : vector<8x128xf32>
      %cst_105 = arith.constant 0.000000e+00 : f32
      %205 = vector.broadcast %cst_105 : f32 to vector<8x128xf32>
      %206 = arith.maximumf %204, %205 : vector<8x128xf32>
      %c0_106 = arith.constant 0 : index
      %c0_107 = arith.constant 0 : index
      %207 = vector.load %arg8[%c0_106, %c0_107] : memref<8x128xf32, #tpu.memory_space<vmem>>, vector<8x128xf32>
      tpu.vector_store %arg8[%c0_106, %c0_107], %206 {strides = array<i32>} : memref<8x128xf32, #tpu.memory_space<vmem>>, vector<8x128xf32>,
    }
    %c8_i32_14 = arith.constant 8 : i32
    %c0_15 = arith.constant 0 : index
    %c0_16 = arith.constant 0 : index
    %12 = vector.load %arg8[%c0_15, %c0_16] : memref<8x128xf32, #tpu.memory_space<vmem>>, vector<8x128xf32>
    %c0_17 = arith.constant 0 : index
    %c0_18 = arith.constant 0 : index
    %13 = vector.load %arg5[%c0_17, %c0_18] : memref<8x128xf32, #tpu.memory_space<vmem>>, vector<8x128xf32>
    tpu.vector_store %arg5[%c0_17, %c0_18], %12 {strides = array<i32>} : memref<8x128xf32, #tpu.memory_space<vmem>>, vector<8x128xf32>,
    return
  }
}

</mosaic_0001>

<llo_original>
// kernel: model_forward.1
$region0: #{model_forward.1}
  #allocation0 [shape = 'u32[]', space=smem, size = 0x4, offset = 0x4, fixed_abs, tag = 'smem constant byte address 0x4 - core index']
  #allocation1 [shape = 'u32[72,128]{1,0:T(1,128)}', space=vmem, size = 0x9000, scoped, tag = 'internal scratch']
  #allocation2 [shape = 'f32[16,128,128]{2,1,0:T(8,128)}', space=vmem, size = 0x100000, scoped, tag = 'scratch operand']
  #allocation3 [shape = 's32[2]{0}', space=sflag, size = 0x8, scoped, tag = 'scratch operand']
  #allocation4 [shape = 'f32[8,128]{1,0:T(8,128)}', space=vmem, size = 0x1000, scoped, tag = 'scratch operand']
  #allocation12 [shape = 's32[]', space=sflag, size = 0x4, offset = 0, fixed_abs, tag = 'sflag constant byte address 0x0 - dummy sync flag']
  #allocation13 [shape = 's32[]', space=sflag, size = 0x4, offset = 0, fixed_abs, tag = 'sflag constant byte address 0x0 - dummy sync flag']
  #allocation14 [shape = 'u32[]', space=smem, size = 0x4, offset = 0x44, fixed_abs, tag = 'smem constant byte address 0x44 - assertion arg 0']
  #allocation15 [shape = 'u32[]', space=smem, size = 0x4, offset = 0x48, fixed_abs, tag = 'smem constant byte address 0x48 - assertion arg 1']
  #allocation16 [shape = 's32[]', space=sflag, size = 0x4, offset = 0, fixed_abs, tag = 'sflag constant byte address 0x0 - dummy sync flag']
  #allocation17 [shape = 's32[]', space=sflag, size = 0x4, offset = 0, fixed_abs, tag = 'sflag constant byte address 0x0 - dummy sync flag']
  %s0 = inlined_call_operand.vmem [shape: f32[8,128], index: 0, kind: input, shape index: {}]
  %s1 = inlined_call_operand.hbm [shape: f32[128,128], index: 1, kind: input, shape index: {}]
  %s2 = inlined_call_operand.hbm [shape: f32[1,128], index: 2, kind: input, shape index: {}]
  %s3 = inlined_call_operand.hbm [shape: f32[64,128], index: 3, kind: input, shape index: {}]
  %s4 = inlined_call_operand.hbm [shape: f32[64,128,128], index: 4, kind: input, shape index: {}]
  %s5 = inlined_call_operand.hbm [shape: f32[8,128], index: 5, kind: output, shape index: {}]
  %s6 = sld [smem:[#allocation0]]
  $region57: #{model_forward.1} parent=0
    _
  %s8 = ssub.s32 1, %s6
  %s9 = scalar_select 0, %s8, %s6
  $region1: #{model_forward.1} parent=0
    #allocation5 [shape = 'u8[65536]{0}', space=vmem, size = 0x10000, scoped, tag = 'input window, operand 1, single buffered']
    #allocation6 [shape = 's32[1]{0}', space=sflag, size = 0x4, scoped, tag = 'scoped memory for model_forward.1']
    #allocation7 [shape = 's32[1]{0}', space=sflag, size = 0x4, scoped, tag = 'scoped memory for model_forward.1']
    #allocation8 [shape = 'u8[512]{0}', space=vmem, size = 0x400, scoped, tag = 'input window, operand 2, single buffered']
    #allocation9 [shape = 's32[1]{0}', space=sflag, size = 0x4, scoped, tag = 'scoped memory for model_forward.1']
    #allocation10 [shape = 'u8[32768]{0}', space=vmem, size = 0x8000, scoped, tag = 'input window, operand 3, single buffered']
    #allocation11 [shape = 'u8[4096]{0}', space=vmem, size = 0x1000, scoped, tag = 'output window, operand 0, single buffered']
    %10 = vsyncpa [#allocation6], 0
    %11 = vsyncpa [#allocation9], 0
    %12 = vsyncpa [#allocation7], 0
    // Predicated region
    $region2: #{model_forward.1} parent=1 // pred_check
      _
    $region3: #{model_forward.1} parent=1 // pred_check_branch
      %14 = sbr.rel (0) target = $region5
    $region4: #{model_forward.1} parent=1 // pred_region
      _
    $region5: #{model_forward.1} parent=1 // pred_fallthru
      _
    // Predicated region
    $region6: #{model_forward.1} parent=1 // pred_check
      _
    $region7: #{model_forward.1} parent=1 // pred_check_branch
      %16 = sbr.rel (0) target = $region9
    $region8: #{model_forward.1} parent=1 // pred_region
      %18 = vsyncadd [#allocation6], 0
      %s19 = sshll.u32 %s1, 4
      %s20 = int_to_ptr.hbm [resolvable:$true] %s19
      %s21 = sshll.u32 [#allocation5], 4
      %s22 = int_to_ptr.vmem [resolvable:$true] %s21
      %27 = dma.hbm_to_vmem [thread:$0]  %s20, 2048, %s22, [#allocation6], 128, 128, 8
    $region9: #{model_forward.1} parent=1 // pred_fallthru
      _
    // Predicated region
    $region10: #{model_forward.1} parent=1 // pred_check
      _
    $region11: #{model_forward.1} parent=1 // pred_check_branch
      %29 = sbr.rel (0) target = $region13
    $region12: #{model_forward.1} parent=1 // pred_region
      %31 = vsyncadd [#allocation9], 0
      %s33 = sshll.u32 %s2, 4
      %s34 = int_to_ptr.hbm [resolvable:$true] %s33
      %s35 = sshll.u32 [#allocation8], 4
      %s36 = int_to_ptr.vmem [resolvable:$true] %s35
      %38 = dma.hbm_to_vmem [thread:$0]  %s34, 16, %s36, [#allocation9]
    $region13: #{model_forward.1} parent=1 // pred_fallthru
      _
    // Predicated region
    $region14: #{model_forward.1} parent=1 // pred_check
      _
    $region15: #{model_forward.1} parent=1 // pred_check_branch
      %40 = sbr.rel (0) target = $region17
    $region16: #{model_forward.1} parent=1 // pred_region
      %42 = vsyncadd [#allocation9], 0
      %s43 = sshll.u32 %s3, 4
      %s44 = int_to_ptr.hbm [resolvable:$true] %s43
      %s45 = sshll.u32 [#allocation10], 4
      %s46 = int_to_ptr.vmem [resolvable:$true] %s45
      %51 = dma.hbm_to_vmem [thread:$0]  %s44, 1024, %s46, [#allocation9], 128, 128, 8
    $region17: #{model_forward.1} parent=1 // pred_fallthru
      _
    // Predicated region
    $region18: #{model_forward.1} parent=1 // pred_check
      _
    $region19: #{model_forward.1} parent=1 // pred_check_branch
      %53 = sbr.rel (0) target = $region21
    $region20: #{model_forward.1} parent=1 // pred_region
      %55 = dma.done [#allocation6], 2048
    $region21: #{model_forward.1} parent=1 // pred_fallthru
      _
    // Predicated region
    $region22: #{model_forward.1} parent=1 // pred_check
      _
    $region23: #{model_forward.1} parent=1 // pred_check_branch
      %57 = sbr.rel (0) target = $region25
    $region24: #{model_forward.1} parent=1 // pred_region
      %59 = dma.done [#allocation9], 16
    $region25: #{model_forward.1} parent=1 // pred_fallthru
      _
    // Predicated region
    $region26: #{model_forward.1} parent=1 // pred_check
      _
    $region27: #{model_forward.1} parent=1 // pred_check_branch
      %61 = sbr.rel (0) target = $region29
    $region28: #{model_forward.1} parent=1 // pred_region
      %63 = dma.done [#allocation9], 1024
    $region29: #{model_forward.1} parent=1 // pred_fallthru
      _
    // Predicated region
    $region30: #{model_forward.1} parent=1 // pred_check
      _
    $region31: #{model_forward.1} parent=1 // pred_check_branch
      %65 = sbr.rel target = $region33
    $region32: #{model_forward.1} parent=1 // pred_region
      %66 = sst [smem:[#allocation14]] [#allocation13]
      %67 = sst [smem:[#allocation15]] [#allocation12]
    $region33: #{model_forward.1} parent=1 // pred_fallthru
      _
    %69 = shalt.err (0)
    %s71 = sshll.u32 %s4, 4
    %s72 = int_to_ptr.hbm [resolvable:$true] %s71
    %s73 = sshll.u32 [#allocation2], 4
    %s74 = int_to_ptr.vmem [resolvable:$true] %s73
    %76 = dma.hbm_to_vmem [thread:$0]  %s72, 16384, %s74, [#allocation3]
    %v77 = vld [vmem:[%s0] sm:$0xff]
    %v78 = vld [vmem:[#allocation5] sm:$0xff]
    %v79 = vld [vmem:[#allocation5 + $0x8] sm:$0xff]
    %v80 = vld [vmem:[#allocation5 + $0x10] sm:$0xff]
    %v81 = vld [vmem:[#allocation5 + $0x18] sm:$0xff]
    %v82 = vld [vmem:[#allocation5 + $0x20] sm:$0xff]
    %v83 = vld [vmem:[#allocation5 + $0x28] sm:$0xff]
    %v84 = vld [vmem:[#allocation5 + $0x30] sm:$0xff]
    %v85 = vld [vmem:[#allocation5 + $0x38] sm:$0xff]
    %v86 = vld [vmem:[#allocation5 + $0x40] sm:$0xff]
    %v87 = vld [vmem:[#allocation5 + $0x48] sm:$0xff]
    %v88 = vld [vmem:[#allocation5 + $0x50] sm:$0xff]
    %v89 = vld [vmem:[#allocation5 + $0x58] sm:$0xff]
    %v90 = vld [vmem:[#allocation5 + $0x60] sm:$0xff]
    %v91 = vld [vmem:[#allocation5 + $0x68] sm:$0xff]
    %v92 = vld [vmem:[#allocation5 + $0x70] sm:$0xff]
    %v93 = vld [vmem:[#allocation5 + $0x78] sm:$0xff]
    %v94 = vld [vmem:[#allocation8] sm:$0x1]
    %v96 = vperm.slane %v94, 0
    %98 = vmatpush.msra.mxu0 %v93
    %99 = vmatpush.msra.mxu0 %v92
    %100 = vmatpush.msra.mxu0 %v91
    %101 = vmatpush.msra.mxu0 %v90
    %102 = vmatpush.msra.mxu0 %v89
    %103 = vmatpush.msra.mxu0 %v88
    %104 = vmatpush.msra.mxu0 %v87
    %105 = vmatpush.msra.mxu0 %v86
    %106 = vmatpush.msra.mxu0 %v85
    %107 = vmatpush.msra.mxu0 %v84
    %108 = vmatpush.msra.mxu0 %v83
    %109 = vmatpush.msra.mxu0 %v82
    %110 = vmatpush.msra.mxu0 %v81
    %111 = vmatpush.msra.mxu0 %v80
    %112 = vmatpush.msra.mxu0 %v79
    %113 = vmatpush.msra.mxu0 %v78
    %114 = vmatmul.f32.gmra.mxu0 %v77
    %v115 = vpop.f32.mrf.mxu0
    %v116 = vadd.f32 %v96, %v115
    %117 = vdwg.mxu0
    %118 = vst [vmem:[#allocation4] sm:$0xff] %v116
    loop: start=0, step=1, limit=8
    $region34: #{model_forward.1} parent=1 // loop_pre_header
      _
    $region35: #{model_forward.1} parent=1 // loop_header
      %s120 = sphi 0, %s124
      %p121 = scmp.ge.s32.totalorder %s120, 8
    $region36: #{model_forward.1} parent=1 // loop_header_branch
      %123 = sbr.rel (%p121) target = $region40
    $region37: #{model_forward.1} parent=1 // loop_body
      %p125 = scmp.lt.s32.totalorder %s120, 0
      %s126 = ssub.s32 0, %s120
      %s127 = scalar_select %p125, %s126, %s120
      %s128 = sand.u32 %s127, 1
      %s129 = ssub.s32 0, %s128
      %s130 = scalar_select %p125, %s129, %s128
      %p131 = scmp.ne.s32.totalorder %s130, 0
      %p132 = scmp.lt.s32.totalorder %s130, 0
      %p133 = pnand %p132, %p131
      %p134 = pneg %p133
      %s135 = sadd.s32 %s130, 2
      %s136 = scalar_select %p134, %s135, %s130
      %s137 = smul.u32 %s136, 8
      %s138 = scalar_lea.sflag [#allocation3], %s136
      %s139 = smul.u32 8, 128
      %s140 = smul.u32 %s139, 1
      %s141 = sshll.u32 %s140, 4
      %142 = dma.done %s138, %s141
      %s143 = sadd.s32 %s120, 1
      %p144 = scmp.lt.s32.totalorder %s143, 8
      // Predicated region
      $region41: #{model_forward.1} parent=37 // pred_check
        %p145 = pneg %p144
      $region42: #{model_forward.1} parent=37 // pred_check_branch
        %147 = sbr.rel (%p145) target = $region44
      $region43: #{model_forward.1} parent=37 // pred_region
        %s148 = ssub.s32 1, %s136
        %s149 = smul.u32 %s143, 8
        %s150 = smul.u32 %s148, 8
        %s151 = smul.u32 %s149, 128
        %s152 = scalar_lea.hbm %s4, %s151
        %s153 = smul.u32 %s150, 128
        %s154 = scalar_lea.vmem [#allocation2], %s153
        %s155 = scalar_lea.sflag [#allocation3], %s148
        // Predicated region
        $region45: #{model_forward.1} parent=43 // pred_check
          _
        $region46: #{model_forward.1} parent=43 // pred_check_branch
          %157 = sbr.rel target = $region48
        $region47: #{model_forward.1} parent=43 // pred_region
          %158 = sst [smem:[#allocation14]] [#allocation17]
          %159 = sst [smem:[#allocation15]] [#allocation16]
        $region48: #{model_forward.1} parent=43 // pred_fallthru
          _
        %161 = shalt.err (0)
        %s163 = sshll.u32 %s152, 4
        %s164 = int_to_ptr.hbm [resolvable:$true] %s163
        %s165 = sshll.u32 %s154, 4
        %s166 = int_to_ptr.vmem [resolvable:$true] %s165
        %168 = dma.hbm_to_vmem [thread:$0]  %s164, 16384, %s166, %s155
      $region44: #{model_forward.1} parent=37 // pred_fallthru
        _
      %v169 = vld [vmem:[#allocation4] sm:$0xff]
      %s170 = smul.u32 %s120, 8
      %s171 = scalar_lea.vmem [#allocation10], %s170
      %v172 = vld [vmem:[%s171] sm:$0xff]
      %s173 = smul.u32 %s137, 128
      %s174 = scalar_lea.vmem [#allocation2], %s173
      %v175 = vld [vmem:[%s174] sm:$0xff]
      %v176 = vld [vmem:[%s174 + $0x8] sm:$0xff]
      %v177 = vld [vmem:[%s174 + $0x10] sm:$0xff]
      %v178 = vld [vmem:[%s174 + $0x18] sm:$0xff]
      %v179 = vld [vmem:[%s174 + $0x20] sm:$0xff]
      %v180 = vld [vmem:[%s174 + $0x28] sm:$0xff]
      %v181 = vld [vmem:[%s174 + $0x30] sm:$0xff]
      %v182 = vld [vmem:[%s174 + $0x38] sm:$0xff]
      %v183 = vld [vmem:[%s174 + $0x40] sm:$0xff]
      %v184 = vld [vmem:[%s174 + $0x48] sm:$0xff]
      %v185 = vld [vmem:[%s174 + $0x50] sm:$0xff]
      %v186 = vld [vmem:[%s174 + $0x58] sm:$0xff]
      %v187 = vld [vmem:[%s174 + $0x60] sm:$0xff]
      %v188 = vld [vmem:[%s174 + $0x68] sm:$0xff]
      %v189 = vld [vmem:[%s174 + $0x70] sm:$0xff]
      %v190 = vld [vmem:[%s174 + $0x78] sm:$0xff]
      %v191 = vperm.slane %v172, 0
      %192 = vmatpush.msra.mxu0 %v190
      %193 = vmatpush.msra.mxu0 %v189
      %194 = vmatpush.msra.mxu0 %v188
      %195 = vmatpush.msra.mxu0 %v187
      %196 = vmatpush.msra.mxu0 %v186
      %197 = vmatpush.msra.mxu0 %v185
      %198 = vmatpush.msra.mxu0 %v184
      %199 = vmatpush.msra.mxu0 %v183
      %200 = vmatpush.msra.mxu0 %v182
      %201 = vmatpush.msra.mxu0 %v181
      %202 = vmatpush.msra.mxu0 %v180
      %203 = vmatpush.msra.mxu0 %v179
      %204 = vmatpush.msra.mxu0 %v178
      %205 = vmatpush.msra.mxu0 %v177
      %206 = vmatpush.msra.mxu0 %v176
      %207 = vmatpush.msra.mxu0 %v175
      %208 = vmatmul.f32.gmra.mxu0 %v169
      %v209 = vpop.f32.mrf.mxu0
      %v210 = vadd.f32 %v191, %v209
      %211 = vdwg.mxu0
      %v212 = vmax.f32 %v210, 0.0
      %v213 = vxor.u32 %v212, 2147483648
      %v214 = vmul.f32 %v213, 1.442695
      %v215 = vpow.pop %v214
      %v216 = vadd.f32 %v215, 1.0
      %v217 = vrcp.pop %v216
      %v218 = vmul.f32 %v216, %v217
      %v219 = vsub.f32 1.0, %v218
      %v220 = vmul.f32 %v217, %v219
      %v221 = vadd.f32 %v217, %v220
      %vm222 = vweird.f32 %v216
      %vm223 = vweird.f32 %v217
      %vm224 = vmor %vm222, %vm223
      %v225 = vsel %vm224, %v217, %v221
      %v226 = vand.u32 2147483647, %v216
      %vm227 = vcmp.eq.f32.partialorder %v226, 8.507059e+37
      %v228 = vand.u32 %v216, 2147483648
      %v229 = vor.u32 1.1754944e-38, %v228
      %v230 = vsel %vm227, %v229, %v225
      %v231 = vmul.f32 1.0, %v230
      %232 = vmatpush.msra.mxu0 %v190
      %233 = vmatpush.msra.mxu0 %v189
      %234 = vmatpush.msra.mxu0 %v188
      %235 = vmatpush.msra.mxu0 %v187
      %236 = vmatpush.msra.mxu0 %v186
      %237 = vmatpush.msra.mxu0 %v185
      %238 = vmatpush.msra.mxu0 %v184
      %239 = vmatpush.msra.mxu0 %v183
      %240 = vmatpush.msra.mxu0 %v182
      %241 = vmatpush.msra.mxu0 %v181
      %242 = vmatpush.msra.mxu0 %v180
      %243 = vmatpush.msra.mxu0 %v179
      %244 = vmatpush.msra.mxu0 %v178
      %245 = vmatpush.msra.mxu0 %v177
      %246 = vmatpush.msra.mxu0 %v176
      %247 = vmatpush.msra.mxu0 %v175
      %248 = vmatmul.f32.gmra.mxu0 %v231
      %v249 = vpop.f32.mrf.mxu0
      %v250 = vadd.f32 %v191, %v249
      %251 = vdwg.mxu0
      %v252 = vmax.f32 %v250, 0.0
      %s253 = sadd.s32 %s137, 1
      %s254 = smul.u32 %s253, 128
      %s255 = scalar_lea.vmem [#allocation2], %s254
      %v256 = vld [vmem:[%s255] sm:$0xff]
      %v257 = vld [vmem:[%s255 + $0x8] sm:$0xff]
      %v258 = vld [vmem:[%s255 + $0x10] sm:$0xff]
      %v259 = vld [vmem:[%s255 + $0x18] sm:$0xff]
      %v260 = vld [vmem:[%s255 + $0x20] sm:$0xff]
      %v261 = vld [vmem:[%s255 + $0x28] sm:$0xff]
      %v262 = vld [vmem:[%s255 + $0x30] sm:$0xff]
      %v263 = vld [vmem:[%s255 + $0x38] sm:$0xff]
      %v264 = vld [vmem:[%s255 + $0x40] sm:$0xff]
      %v265 = vld [vmem:[%s255 + $0x48] sm:$0xff]
      %v266 = vld [vmem:[%s255 + $0x50] sm:$0xff]
      %v267 = vld [vmem:[%s255 + $0x58] sm:$0xff]
      %v268 = vld [vmem:[%s255 + $0x60] sm:$0xff]
      %v269 = vld [vmem:[%s255 + $0x68] sm:$0xff]
      %v270 = vld [vmem:[%s255 + $0x70] sm:$0xff]
      %v271 = vld [vmem:[%s255 + $0x78] sm:$0xff]
      %v272 = vperm.slane %v172, 1
      %273 = vmatpush.msra.mxu0 %v271
      %274 = vmatpush.msra.mxu0 %v270
      %275 = vmatpush.msra.mxu0 %v269
      %276 = vmatpush.msra.mxu0 %v268
      %277 = vmatpush.msra.mxu0 %v267
      %278 = vmatpush.msra.mxu0 %v266
      %279 = vmatpush.msra.mxu0 %v265
      %280 = vmatpush.msra.mxu0 %v264
      %281 = vmatpush.msra.mxu0 %v263
      %282 = vmatpush.msra.mxu0 %v262
      %283 = vmatpush.msra.mxu0 %v261
      %284 = vmatpush.msra.mxu0 %v260
      %285 = vmatpush.msra.mxu0 %v259
      %286 = vmatpush.msra.mxu0 %v258
      %287 = vmatpush.msra.mxu0 %v257
      %288 = vmatpush.msra.mxu0 %v256
      %289 = vmatmul.f32.gmra.mxu0 %v252
      %v290 = vpop.f32.mrf.mxu0
      %v291 = vadd.f32 %v272, %v290
      %292 = vdwg.mxu0
      %v293 = vmax.f32 %v291, 0.0
      %v294 = vxor.u32 %v293, 2147483648
      %v295 = vmul.f32 %v294, 1.442695
      %v296 = vpow.pop %v295
      %v297 = vadd.f32 %v296, 1.0
      %v298 = vrcp.pop %v297
      %v299 = vmul.f32 %v297, %v298
      %v300 = vsub.f32 1.0, %v299
      %v301 = vmul.f32 %v298, %v300
      %v302 = vadd.f32 %v298, %v301
      %vm303 = vweird.f32 %v297
      %vm304 = vweird.f32 %v298
      %vm305 = vmor %vm303, %vm304
      %v306 = vsel %vm305, %v298, %v302
      %v307 = vand.u32 2147483647, %v297
      %vm308 = vcmp.eq.f32.partialorder %v307, 8.507059e+37
      %v309 = vand.u32 %v297, 2147483648
      %v310 = vor.u32 1.1754944e-38, %v309
      %v311 = vsel %vm308, %v310, %v306
      %v312 = vmul.f32 1.0, %v311
      %313 = vmatpush.msra.mxu0 %v271
      %314 = vmatpush.msra.mxu0 %v270
      %315 = vmatpush.msra.mxu0 %v269
      %316 = vmatpush.msra.mxu0 %v268
      %317 = vmatpush.msra.mxu0 %v267
      %318 = vmatpush.msra.mxu0 %v266
      %319 = vmatpush.msra.mxu0 %v265
      %320 = vmatpush.msra.mxu0 %v264
      %321 = vmatpush.msra.mxu0 %v263
      %322 = vmatpush.msra.mxu0 %v262
      %323 = vmatpush.msra.mxu0 %v261
      %324 = vmatpush.msra.mxu0 %v260
      %325 = vmatpush.msra.mxu0 %v259
      %326 = vmatpush.msra.mxu0 %v258
      %327 = vmatpush.msra.mxu0 %v257
      %328 = vmatpush.msra.mxu0 %v256
      %329 = vmatmul.f32.gmra.mxu0 %v312
      %v330 = vpop.f32.mrf.mxu0
      %v331 = vadd.f32 %v272, %v330
      %332 = vdwg.mxu0
      %v333 = vmax.f32 %v331, 0.0
      %s334 = sadd.s32 %s137, 2
      %s335 = smul.u32 %s334, 128
      %s336 = scalar_lea.vmem [#allocation2], %s335
      %v337 = vld [vmem:[%s336] sm:$0xff]
      %v338 = vld [vmem:[%s336 + $0x8] sm:$0xff]
      %v339 = vld [vmem:[%s336 + $0x10] sm:$0xff]
      %v340 = vld [vmem:[%s336 + $0x18] sm:$0xff]
      %v341 = vld [vmem:[%s336 + $0x20] sm:$0xff]
      %v342 = vld [vmem:[%s336 + $0x28] sm:$0xff]
      %v343 = vld [vmem:[%s336 + $0x30] sm:$0xff]
      %v344 = vld [vmem:[%s336 + $0x38] sm:$0xff]
      %v345 = vld [vmem:[%s336 + $0x40] sm:$0xff]
      %v346 = vld [vmem:[%s336 + $0x48] sm:$0xff]
      %v347 = vld [vmem:[%s336 + $0x50] sm:$0xff]
      %v348 = vld [vmem:[%s336 + $0x58] sm:$0xff]
      %v349 = vld [vmem:[%s336 + $0x60] sm:$0xff]
      %v350 = vld [vmem:[%s336 + $0x68] sm:$0xff]
      %v351 = vld [vmem:[%s336 + $0x70] sm:$0xff]
      %v352 = vld [vmem:[%s336 + $0x78] sm:$0xff]
      %v353 = vperm.slane %v172, 2
      %354 = vmatpush.msra.mxu0 %v352
      %355 = vmatpush.msra.mxu0 %v351
      %356 = vmatpush.msra.mxu0 %v350
      %357 = vmatpush.msra.mxu0 %v349
      %358 = vmatpush.msra.mxu0 %v348
      %359 = vmatpush.msra.mxu0 %v347
      %360 = vmatpush.msra.mxu0 %v346
      %361 = vmatpush.msra.mxu0 %v345
      %362 = vmatpush.msra.mxu0 %v344
      %363 = vmatpush.msra.mxu0 %v343
      %364 = vmatpush.msra.mxu0 %v342
      %365 = vmatpush.msra.mxu0 %v341
      %366 = vmatpush.msra.mxu0 %v340
      %367 = vmatpush.msra.mxu0 %v339
      %368 = vmatpush.msra.mxu0 %v338
      %369 = vmatpush.msra.mxu0 %v337
      %370 = vmatmul.f32.gmra.mxu0 %v333
      %v371 = vpop.f32.mrf.mxu0
      %v372 = vadd.f32 %v353, %v371
      %373 = vdwg.mxu0
      %v374 = vmax.f32 %v372, 0.0
      %v375 = vxor.u32 %v374, 2147483648
      %v376 = vmul.f32 %v375, 1.442695
      %v377 = vpow.pop %v376
      %v378 = vadd.f32 %v377, 1.0
      %v379 = vrcp.pop %v378
      %v380 = vmul.f32 %v378, %v379
      %v381 = vsub.f32 1.0, %v380
      %v382 = vmul.f32 %v379, %v381
      %v383 = vadd.f32 %v379, %v382
      %vm384 = vweird.f32 %v378
      %vm385 = vweird.f32 %v379
      %vm386 = vmor %vm384, %vm385
      %v387 = vsel %vm386, %v379, %v383
      %v388 = vand.u32 2147483647, %v378
      %vm389 = vcmp.eq.f32.partialorder %v388, 8.507059e+37
      %v390 = vand.u32 %v378, 2147483648
      %v391 = vor.u32 1.1754944e-38, %v390
      %v392 = vsel %vm389, %v391, %v387
      %v393 = vmul.f32 1.0, %v392
      %394 = vmatpush.msra.mxu0 %v352
      %395 = vmatpush.msra.mxu0 %v351
      %396 = vmatpush.msra.mxu0 %v350
      %397 = vmatpush.msra.mxu0 %v349
      %398 = vmatpush.msra.mxu0 %v348
      %399 = vmatpush.msra.mxu0 %v347
      %400 = vmatpush.msra.mxu0 %v346
      %401 = vmatpush.msra.mxu0 %v345
      %402 = vmatpush.msra.mxu0 %v344
      %403 = vmatpush.msra.mxu0 %v343
      %404 = vmatpush.msra.mxu0 %v342
      %405 = vmatpush.msra.mxu0 %v341
      %406 = vmatpush.msra.mxu0 %v340
      %407 = vmatpush.msra.mxu0 %v339
      %408 = vmatpush.msra.mxu0 %v338
      %409 = vmatpush.msra.mxu0 %v337
      %410 = vmatmul.f32.gmra.mxu0 %v393
      %v411 = vpop.f32.mrf.mxu0
      %v412 = vadd.f32 %v353, %v411
      %413 = vdwg.mxu0
      %v414 = vmax.f32 %v412, 0.0
      %s415 = sadd.s32 %s137, 3
      %s416 = smul.u32 %s415, 128
      %s417 = scalar_lea.vmem [#allocation2], %s416
      %v418 = vld [vmem:[%s417] sm:$0xff]
      %v419 = vld [vmem:[%s417 + $0x8] sm:$0xff]
      %v420 = vld [vmem:[%s417 + $0x10] sm:$0xff]
      %v421 = vld [vmem:[%s417 + $0x18] sm:$0xff]
      %v422 = vld [vmem:[%s417 + $0x20] sm:$0xff]
      %v423 = vld [vmem:[%s417 + $0x28] sm:$0xff]
      %v424 = vld [vmem:[%s417 + $0x30] sm:$0xff]
      %v425 = vld [vmem:[%s417 + $0x38] sm:$0xff]
      %v426 = vld [vmem:[%s417 + $0x40] sm:$0xff]
      %v427 = vld [vmem:[%s417 + $0x48] sm:$0xff]
      %v428 = vld [vmem:[%s417 + $0x50] sm:$0xff]
      %v429 = vld [vmem:[%s417 + $0x58] sm:$0xff]
      %v430 = vld [vmem:[%s417 + $0x60] sm:$0xff]
      %v431 = vld [vmem:[%s417 + $0x68] sm:$0xff]
      %v432 = vld [vmem:[%s417 + $0x70] sm:$0xff]
      %v433 = vld [vmem:[%s417 + $0x78] sm:$0xff]
      %v434 = vperm.slane %v172, 3
      %435 = vmatpush.msra.mxu0 %v433
      %436 = vmatpush.msra.mxu0 %v432
      %437 = vmatpush.msra.mxu0 %v431
      %438 = vmatpush.msra.mxu0 %v430
      %439 = vmatpush.msra.mxu0 %v429
      %440 = vmatpush.msra.mxu0 %v428
      %441 = vmatpush.msra.mxu0 %v427
      %442 = vmatpush.msra.mxu0 %v426
      %443 = vmatpush.msra.mxu0 %v425
      %444 = vmatpush.msra.mxu0 %v424
      %445 = vmatpush.msra.mxu0 %v423
      %446 = vmatpush.msra.mxu0 %v422
      %447 = vmatpush.msra.mxu0 %v421
      %448 = vmatpush.msra.mxu0 %v420
      %449 = vmatpush.msra.mxu0 %v419
      %450 = vmatpush.msra.mxu0 %v418
      %451 = vmatmul.f32.gmra.mxu0 %v414
      %v452 = vpop.f32.mrf.mxu0
      %v453 = vadd.f32 %v434, %v452
      %454 = vdwg.mxu0
      %v455 = vmax.f32 %v453, 0.0
      %v456 = vxor.u32 %v455, 2147483648
      %v457 = vmul.f32 %v456, 1.442695
      %v458 = vpow.pop %v457
      %v459 = vadd.f32 %v458, 1.0
      %v460 = vrcp.pop %v459
      %v461 = vmul.f32 %v459, %v460
      %v462 = vsub.f32 1.0, %v461
      %v463 = vmul.f32 %v460, %v462
      %v464 = vadd.f32 %v460, %v463
      %vm465 = vweird.f32 %v459
      %vm466 = vweird.f32 %v460
      %vm467 = vmor %vm465, %vm466
      %v468 = vsel %vm467, %v460, %v464
      %v469 = vand.u32 2147483647, %v459
      %vm470 = vcmp.eq.f32.partialorder %v469, 8.507059e+37
      %v471 = vand.u32 %v459, 2147483648
      %v472 = vor.u32 1.1754944e-38, %v471
      %v473 = vsel %vm470, %v472, %v468
      %v474 = vmul.f32 1.0, %v473
      %475 = vmatpush.msra.mxu0 %v433
      %476 = vmatpush.msra.mxu0 %v432
      %477 = vmatpush.msra.mxu0 %v431
      %478 = vmatpush.msra.mxu0 %v430
      %479 = vmatpush.msra.mxu0 %v429
      %480 = vmatpush.msra.mxu0 %v428
      %481 = vmatpush.msra.mxu0 %v427
      %482 = vmatpush.msra.mxu0 %v426
      %483 = vmatpush.msra.mxu0 %v425
      %484 = vmatpush.msra.mxu0 %v424
      %485 = vmatpush.msra.mxu0 %v423
      %486 = vmatpush.msra.mxu0 %v422
      %487 = vmatpush.msra.mxu0 %v421
      %488 = vmatpush.msra.mxu0 %v420
      %489 = vmatpush.msra.mxu0 %v419
      %490 = vmatpush.msra.mxu0 %v418
      %491 = vmatmul.f32.gmra.mxu0 %v474
      %v492 = vpop.f32.mrf.mxu0
      %v493 = vadd.f32 %v434, %v492
      %494 = vdwg.mxu0
      %v495 = vmax.f32 %v493, 0.0
      %s496 = sadd.s32 %s137, 4
      %s497 = smul.u32 %s496, 128
      %s498 = scalar_lea.vmem [#allocation2], %s497
      %v499 = vld [vmem:[%s498] sm:$0xff]
      %v500 = vld [vmem:[%s498 + $0x8] sm:$0xff]
      %v501 = vld [vmem:[%s498 + $0x10] sm:$0xff]
      %v502 = vld [vmem:[%s498 + $0x18] sm:$0xff]
      %v503 = vld [vmem:[%s498 + $0x20] sm:$0xff]
      %v504 = vld [vmem:[%s498 + $0x28] sm:$0xff]
      %v505 = vld [vmem:[%s498 + $0x30] sm:$0xff]
      %v506 = vld [vmem:[%s498 + $0x38] sm:$0xff]
      %v507 = vld [vmem:[%s498 + $0x40] sm:$0xff]
      %v508 = vld [vmem:[%s498 + $0x48] sm:$0xff]
      %v509 = vld [vmem:[%s498 + $0x50] sm:$0xff]
      %v510 = vld [vmem:[%s498 + $0x58] sm:$0xff]
      %v511 = vld [vmem:[%s498 + $0x60] sm:$0xff]
      %v512 = vld [vmem:[%s498 + $0x68] sm:$0xff]
      %v513 = vld [vmem:[%s498 + $0x70] sm:$0xff]
      %v514 = vld [vmem:[%s498 + $0x78] sm:$0xff]
      %v515 = vperm.slane %v172, 4
      %516 = vmatpush.msra.mxu0 %v514
      %517 = vmatpush.msra.mxu0 %v513
      %518 = vmatpush.msra.mxu0 %v512
      %519 = vmatpush.msra.mxu0 %v511
      %520 = vmatpush.msra.mxu0 %v510
      %521 = vmatpush.msra.mxu0 %v509
      %522 = vmatpush.msra.mxu0 %v508
      %523 = vmatpush.msra.mxu0 %v507
      %524 = vmatpush.msra.mxu0 %v506
      %525 = vmatpush.msra.mxu0 %v505
      %526 = vmatpush.msra.mxu0 %v504
      %527 = vmatpush.msra.mxu0 %v503
      %528 = vmatpush.msra.mxu0 %v502
      %529 = vmatpush.msra.mxu0 %v501
      %530 = vmatpush.msra.mxu0 %v500
      %531 = vmatpush.msra.mxu0 %v499
      %532 = vmatmul.f32.gmra.mxu0 %v495
      %v533 = vpop.f32.mrf.mxu0
      %v534 = vadd.f32 %v515, %v533
      %535 = vdwg.mxu0
      %v536 = vmax.f32 %v534, 0.0
      %v537 = vxor.u32 %v536, 2147483648
      %v538 = vmul.f32 %v537, 1.442695
      %v539 = vpow.pop %v538
      %v540 = vadd.f32 %v539, 1.0
      %v541 = vrcp.pop %v540
      %v542 = vmul.f32 %v540, %v541
      %v543 = vsub.f32 1.0, %v542
      %v544 = vmul.f32 %v541, %v543
      %v545 = vadd.f32 %v541, %v544
      %vm546 = vweird.f32 %v540
      %vm547 = vweird.f32 %v541
      %vm548 = vmor %vm546, %vm547
      %v549 = vsel %vm548, %v541, %v545
      %v550 = vand.u32 2147483647, %v540
      %vm551 = vcmp.eq.f32.partialorder %v550, 8.507059e+37
      %v552 = vand.u32 %v540, 2147483648
      %v553 = vor.u32 1.1754944e-38, %v552
      %v554 = vsel %vm551, %v553, %v549
      %v555 = vmul.f32 1.0, %v554
      %556 = vmatpush.msra.mxu0 %v514
      %557 = vmatpush.msra.mxu0 %v513
      %558 = vmatpush.msra.mxu0 %v512
      %559 = vmatpush.msra.mxu0 %v511
      %560 = vmatpush.msra.mxu0 %v510
      %561 = vmatpush.msra.mxu0 %v509
      %562 = vmatpush.msra.mxu0 %v508
      %563 = vmatpush.msra.mxu0 %v507
      %564 = vmatpush.msra.mxu0 %v506
      %565 = vmatpush.msra.mxu0 %v505
      %566 = vmatpush.msra.mxu0 %v504
      %567 = vmatpush.msra.mxu0 %v503
      %568 = vmatpush.msra.mxu0 %v502
      %569 = vmatpush.msra.mxu0 %v501
      %570 = vmatpush.msra.mxu0 %v500
      %571 = vmatpush.msra.mxu0 %v499
      %572 = vmatmul.f32.gmra.mxu0 %v555
      %v573 = vpop.f32.mrf.mxu0
      %v574 = vadd.f32 %v515, %v573
      %575 = vdwg.mxu0
      %v576 = vmax.f32 %v574, 0.0
      %s577 = sadd.s32 %s137, 5
      %s578 = smul.u32 %s577, 128
      %s579 = scalar_lea.vmem [#allocation2], %s578
      %v580 = vld [vmem:[%s579] sm:$0xff]
      %v581 = vld [vmem:[%s579 + $0x8] sm:$0xff]
      %v582 = vld [vmem:[%s579 + $0x10] sm:$0xff]
      %v583 = vld [vmem:[%s579 + $0x18] sm:$0xff]
      %v584 = vld [vmem:[%s579 + $0x20] sm:$0xff]
      %v585 = vld [vmem:[%s579 + $0x28] sm:$0xff]
      %v586 = vld [vmem:[%s579 + $0x30] sm:$0xff]
      %v587 = vld [vmem:[%s579 + $0x38] sm:$0xff]
      %v588 = vld [vmem:[%s579 + $0x40] sm:$0xff]
      %v589 = vld [vmem:[%s579 + $0x48] sm:$0xff]
      %v590 = vld [vmem:[%s579 + $0x50] sm:$0xff]
      %v591 = vld [vmem:[%s579 + $0x58] sm:$0xff]
      %v592 = vld [vmem:[%s579 + $0x60] sm:$0xff]
      %v593 = vld [vmem:[%s579 + $0x68] sm:$0xff]
      %v594 = vld [vmem:[%s579 + $0x70] sm:$0xff]
      %v595 = vld [vmem:[%s579 + $0x78] sm:$0xff]
      %v596 = vperm.slane %v172, 5
      %597 = vmatpush.msra.mxu0 %v595
      %598 = vmatpush.msra.mxu0 %v594
      %599 = vmatpush.msra.mxu0 %v593
      %600 = vmatpush.msra.mxu0 %v592
      %601 = vmatpush.msra.mxu0 %v591
      %602 = vmatpush.msra.mxu0 %v590
      %603 = vmatpush.msra.mxu0 %v589
      %604 = vmatpush.msra.mxu0 %v588
      %605 = vmatpush.msra.mxu0 %v587
      %606 = vmatpush.msra.mxu0 %v586
      %607 = vmatpush.msra.mxu0 %v585
      %608 = vmatpush.msra.mxu0 %v584
      %609 = vmatpush.msra.mxu0 %v583
      %610 = vmatpush.msra.mxu0 %v582
      %611 = vmatpush.msra.mxu0 %v581
      %612 = vmatpush.msra.mxu0 %v580
      %613 = vmatmul.f32.gmra.mxu0 %v576
      %v614 = vpop.f32.mrf.mxu0
      %v615 = vadd.f32 %v596, %v614
      %616 = vdwg.mxu0
      %v617 = vmax.f32 %v615, 0.0
      %v618 = vxor.u32 %v617, 2147483648
      %v619 = vmul.f32 %v618, 1.442695
      %v620 = vpow.pop %v619
      %v621 = vadd.f32 %v620, 1.0
      %v622 = vrcp.pop %v621
      %v623 = vmul.f32 %v621, %v622
      %v624 = vsub.f32 1.0, %v623
      %v625 = vmul.f32 %v622, %v624
      %v626 = vadd.f32 %v622, %v625
      %vm627 = vweird.f32 %v621
      %vm628 = vweird.f32 %v622
      %vm629 = vmor %vm627, %vm628
      %v630 = vsel %vm629, %v622, %v626
      %v631 = vand.u32 2147483647, %v621
      %vm632 = vcmp.eq.f32.partialorder %v631, 8.507059e+37
      %v633 = vand.u32 %v621, 2147483648
      %v634 = vor.u32 1.1754944e-38, %v633
      %v635 = vsel %vm632, %v634, %v630
      %v636 = vmul.f32 1.0, %v635
      %637 = vmatpush.msra.mxu0 %v595
      %638 = vmatpush.msra.mxu0 %v594
      %639 = vmatpush.msra.mxu0 %v593
      %640 = vmatpush.msra.mxu0 %v592
      %641 = vmatpush.msra.mxu0 %v591
      %642 = vmatpush.msra.mxu0 %v590
      %643 = vmatpush.msra.mxu0 %v589
      %644 = vmatpush.msra.mxu0 %v588
      %645 = vmatpush.msra.mxu0 %v587
      %646 = vmatpush.msra.mxu0 %v586
      %647 = vmatpush.msra.mxu0 %v585
      %648 = vmatpush.msra.mxu0 %v584
      %649 = vmatpush.msra.mxu0 %v583
      %650 = vmatpush.msra.mxu0 %v582
      %651 = vmatpush.msra.mxu0 %v581
      %652 = vmatpush.msra.mxu0 %v580
      %653 = vmatmul.f32.gmra.mxu0 %v636
      %v654 = vpop.f32.mrf.mxu0
      %v655 = vadd.f32 %v596, %v654
      %656 = vdwg.mxu0
      %v657 = vmax.f32 %v655, 0.0
      %s658 = sadd.s32 %s137, 6
      %s659 = smul.u32 %s658, 128
      %s660 = scalar_lea.vmem [#allocation2], %s659
      %v661 = vld [vmem:[%s660] sm:$0xff]
      %v662 = vld [vmem:[%s660 + $0x8] sm:$0xff]
      %v663 = vld [vmem:[%s660 + $0x10] sm:$0xff]
      %v664 = vld [vmem:[%s660 + $0x18] sm:$0xff]
      %v665 = vld [vmem:[%s660 + $0x20] sm:$0xff]
      %v666 = vld [vmem:[%s660 + $0x28] sm:$0xff]
      %v667 = vld [vmem:[%s660 + $0x30] sm:$0xff]
      %v668 = vld [vmem:[%s660 + $0x38] sm:$0xff]
      %v669 = vld [vmem:[%s660 + $0x40] sm:$0xff]
      %v670 = vld [vmem:[%s660 + $0x48] sm:$0xff]
      %v671 = vld [vmem:[%s660 + $0x50] sm:$0xff]
      %v672 = vld [vmem:[%s660 + $0x58] sm:$0xff]
      %v673 = vld [vmem:[%s660 + $0x60] sm:$0xff]
      %v674 = vld [vmem:[%s660 + $0x68] sm:$0xff]
      %v675 = vld [vmem:[%s660 + $0x70] sm:$0xff]
      %v676 = vld [vmem:[%s660 + $0x78] sm:$0xff]
      %v677 = vperm.slane %v172, 6
      %678 = vmatpush.msra.mxu0 %v676
      %679 = vmatpush.msra.mxu0 %v675
      %680 = vmatpush.msra.mxu0 %v674
      %681 = vmatpush.msra.mxu0 %v673
      %682 = vmatpush.msra.mxu0 %v672
      %683 = vmatpush.msra.mxu0 %v671
      %684 = vmatpush.msra.mxu0 %v670
      %685 = vmatpush.msra.mxu0 %v669
      %686 = vmatpush.msra.mxu0 %v668
      %687 = vmatpush.msra.mxu0 %v667
      %688 = vmatpush.msra.mxu0 %v666
      %689 = vmatpush.msra.mxu0 %v665
      %690 = vmatpush.msra.mxu0 %v664
      %691 = vmatpush.msra.mxu0 %v663
      %692 = vmatpush.msra.mxu0 %v662
      %693 = vmatpush.msra.mxu0 %v661
      %694 = vmatmul.f32.gmra.mxu0 %v657
      %v695 = vpop.f32.mrf.mxu0
      %v696 = vadd.f32 %v677, %v695
      %697 = vdwg.mxu0
      %v698 = vmax.f32 %v696, 0.0
      %v699 = vxor.u32 %v698, 2147483648
      %v700 = vmul.f32 %v699, 1.442695
      %v701 = vpow.pop %v700
      %v702 = vadd.f32 %v701, 1.0
      %v703 = vrcp.pop %v702
      %v704 = vmul.f32 %v702, %v703
      %v705 = vsub.f32 1.0, %v704
      %v706 = vmul.f32 %v703, %v705
      %v707 = vadd.f32 %v703, %v706
      %vm708 = vweird.f32 %v702
      %vm709 = vweird.f32 %v703
      %vm710 = vmor %vm708, %vm709
      %v711 = vsel %vm710, %v703, %v707
      %v712 = vand.u32 2147483647, %v702
      %vm713 = vcmp.eq.f32.partialorder %v712, 8.507059e+37
      %v714 = vand.u32 %v702, 2147483648
      %v715 = vor.u32 1.1754944e-38, %v714
      %v716 = vsel %vm713, %v715, %v711
      %v717 = vmul.f32 1.0, %v716
      %718 = vmatpush.msra.mxu0 %v676
      %719 = vmatpush.msra.mxu0 %v675
      %720 = vmatpush.msra.mxu0 %v674
      %721 = vmatpush.msra.mxu0 %v673
      %722 = vmatpush.msra.mxu0 %v672
      %723 = vmatpush.msra.mxu0 %v671
      %724 = vmatpush.msra.mxu0 %v670
      %725 = vmatpush.msra.mxu0 %v669
      %726 = vmatpush.msra.mxu0 %v668
      %727 = vmatpush.msra.mxu0 %v667
      %728 = vmatpush.msra.mxu0 %v666
      %729 = vmatpush.msra.mxu0 %v665
      %730 = vmatpush.msra.mxu0 %v664
      %731 = vmatpush.msra.mxu0 %v663
      %732 = vmatpush.msra.mxu0 %v662
      %733 = vmatpush.msra.mxu0 %v661
      %734 = vmatmul.f32.gmra.mxu0 %v717
      %v735 = vpop.f32.mrf.mxu0
      %v736 = vadd.f32 %v677, %v735
      %737 = vdwg.mxu0
      %v738 = vmax.f32 %v736, 0.0
      %s739 = sadd.s32 %s137, 7
      %s740 = smul.u32 %s739, 128
      %s741 = scalar_lea.vmem [#allocation2], %s740
      %v742 = vld [vmem:[%s741] sm:$0xff]
      %v743 = vld [vmem:[%s741 + $0x8] sm:$0xff]
      %v744 = vld [vmem:[%s741 + $0x10] sm:$0xff]
      %v745 = vld [vmem:[%s741 + $0x18] sm:$0xff]
      %v746 = vld [vmem:[%s741 + $0x20] sm:$0xff]
      %v747 = vld [vmem:[%s741 + $0x28] sm:$0xff]
      %v748 = vld [vmem:[%s741 + $0x30] sm:$0xff]
      %v749 = vld [vmem:[%s741 + $0x38] sm:$0xff]
      %v750 = vld [vmem:[%s741 + $0x40] sm:$0xff]
      %v751 = vld [vmem:[%s741 + $0x48] sm:$0xff]
      %v752 = vld [vmem:[%s741 + $0x50] sm:$0xff]
      %v753 = vld [vmem:[%s741 + $0x58] sm:$0xff]
      %v754 = vld [vmem:[%s741 + $0x60] sm:$0xff]
      %v755 = vld [vmem:[%s741 + $0x68] sm:$0xff]
      %v756 = vld [vmem:[%s741 + $0x70] sm:$0xff]
      %v757 = vld [vmem:[%s741 + $0x78] sm:$0xff]
      %v758 = vperm.slane %v172, 7
      %759 = vmatpush.msra.mxu0 %v757
      %760 = vmatpush.msra.mxu0 %v756
      %761 = vmatpush.msra.mxu0 %v755
      %762 = vmatpush.msra.mxu0 %v754
      %763 = vmatpush.msra.mxu0 %v753
      %764 = vmatpush.msra.mxu0 %v752
      %765 = vmatpush.msra.mxu0 %v751
      %766 = vmatpush.msra.mxu0 %v750
      %767 = vmatpush.msra.mxu0 %v749
      %768 = vmatpush.msra.mxu0 %v748
      %769 = vmatpush.msra.mxu0 %v747
      %770 = vmatpush.msra.mxu0 %v746
      %771 = vmatpush.msra.mxu0 %v745
      %772 = vmatpush.msra.mxu0 %v744
      %773 = vmatpush.msra.mxu0 %v743
      %774 = vmatpush.msra.mxu0 %v742
      %775 = vmatmul.f32.gmra.mxu0 %v738
      %v776 = vpop.f32.mrf.mxu0
      %v777 = vadd.f32 %v758, %v776
      %778 = vdwg.mxu0
      %v779 = vmax.f32 %v777, 0.0
      %v780 = vxor.u32 %v779, 2147483648
      %v781 = vmul.f32 %v780, 1.442695
      %v782 = vpow.pop %v781
      %v783 = vadd.f32 %v782, 1.0
      %v784 = vrcp.pop %v783
      %v785 = vmul.f32 %v783, %v784
      %v786 = vsub.f32 1.0, %v785
      %v787 = vmul.f32 %v784, %v786
      %v788 = vadd.f32 %v784, %v787
      %vm789 = vweird.f32 %v783
      %vm790 = vweird.f32 %v784
      %vm791 = vmor %vm789, %vm790
      %v792 = vsel %vm791, %v784, %v788
      %v793 = vand.u32 2147483647, %v783
      %vm794 = vcmp.eq.f32.partialorder %v793, 8.507059e+37
      %v795 = vand.u32 %v783, 2147483648
      %v796 = vor.u32 1.1754944e-38, %v795
      %v797 = vsel %vm794, %v796, %v792
      %v798 = vmul.f32 1.0, %v797
      %799 = vmatpush.msra.mxu0 %v757
      %800 = vmatpush.msra.mxu0 %v756
      %801 = vmatpush.msra.mxu0 %v755
      %802 = vmatpush.msra.mxu0 %v754
      %803 = vmatpush.msra.mxu0 %v753
      %804 = vmatpush.msra.mxu0 %v752
      %805 = vmatpush.msra.mxu0 %v751
      %806 = vmatpush.msra.mxu0 %v750
      %807 = vmatpush.msra.mxu0 %v749
      %808 = vmatpush.msra.mxu0 %v748
      %809 = vmatpush.msra.mxu0 %v747
      %810 = vmatpush.msra.mxu0 %v746
      %811 = vmatpush.msra.mxu0 %v745
      %812 = vmatpush.msra.mxu0 %v744
      %813 = vmatpush.msra.mxu0 %v743
      %814 = vmatpush.msra.mxu0 %v742
      %815 = vmatmul.f32.gmra.mxu0 %v798
      %v816 = vpop.f32.mrf.mxu0
      %v817 = vadd.f32 %v758, %v816
      %818 = vdwg.mxu0
      %v819 = vmax.f32 %v817, 0.0
      %820 = vst [vmem:[#allocation4] sm:$0xff] %v819
    $region38: #{model_forward.1} parent=1 // loop_footer
      %s124 = sadd.s32 1, %s120
    $region39: #{model_forward.1} parent=1 // loop_footer_branch
      %119 = sbr.rel target = $region35
    $region40: #{model_forward.1} parent=1 // loop_exit
      _
    %v821 = vld [vmem:[#allocation4] sm:$0xff]
    %822 = vst [vmem:[#allocation11] sm:$0xff] %v821
    // Predicated region
    $region49: #{model_forward.1} parent=1 // pred_check
      _
    $region50: #{model_forward.1} parent=1 // pred_check_branch
      %824 = sbr.rel (0) target = $region52
    $region51: #{model_forward.1} parent=1 // pred_region
      %826 = vsyncadd [#allocation7], 0
      %s828 = sshll.u32 [#allocation11], 4
      %s829 = int_to_ptr.vmem [resolvable:$true] %s828
      %s830 = sshll.u32 %s5, 4
      %s831 = int_to_ptr.hbm [resolvable:$true] %s830
      %833 = dma.vmem_to_hbm [thread:$0]  %s829, 128, %s831, [#allocation7]
    $region52: #{model_forward.1} parent=1 // pred_fallthru
      _
    // Predicated region
    $region53: #{model_forward.1} parent=1 // pred_check
      _
    $region54: #{model_forward.1} parent=1 // pred_check_branch
      %835 = sbr.rel (0) target = $region56
    $region55: #{model_forward.1} parent=1 // pred_region
      %837 = dma.done [#allocation7], 128
    $region56: #{model_forward.1} parent=1 // pred_fallthru
      _
    %838 = vsyncpa [#allocation6], 1
    %839 = vsyncpa [#allocation9], 1
    %840 = vsyncpa [#allocation7], 1
  %841 = vsyncmov [#allocation3]
  %s842 = vpop.sfrf %841
  %p843 = scmp.eq.s32.totalorder %s842, 0
  %p844 = pneg %p843
  %846 = shalt.err (%p844)
  %s847 = scalar_lea.sflag [#allocation3], 1
  %848 = vsyncmov %s847
  %s849 = vpop.sfrf %848
  %p850 = scmp.eq.s32.totalorder %s849, 0
  %p851 = pneg %p850
  %853 = shalt.err (%p851)

</llo_original>
